<compile_context>
chip_gen: v6e
topology: v6e:2x2x1
jax: 0.10.0
libtpu: 0.0.40
codegen_flags: <defaults>
</compile_context>

<pallas_src>
import numpy as np
import jax
import jax.numpy as jnp
from jax.experimental import pallas as pl
from jax.experimental.pallas import tpu as pltpu


# ------------------------------ fused Pallas kernel ------------------------------

def make_encoder_kernel(n_layers, B, S, D, dff, v_pad):
    """One launch: embed+PE -> n_layers ResBlocks over (B*S, D) -> mean over seq.

    Ref order: tokens (B*S,1) i32, pe (B*S,D), emb (v_pad,D),
               per layer (w1, b1, w2, b2, gamma, beta), output (B, D).
    """
    BS = B * S

    def kernel(*refs):
        tok_ref, pe_ref, emb_ref = refs[0], refs[1], refs[2]
        layer_refs = refs[3:3 + 6 * n_layers]
        o_ref = refs[-1]

        # ---- embedding gather as one-hot @ emb on the MXU, + positional encoding ----
        tok = tok_ref[...]                                           # (BS, 1) int32
        onehot = (jax.lax.broadcasted_iota(jnp.int32, (BS, v_pad), 1) == tok
                  ).astype(jnp.float32)                              # (BS, v_pad)
        x = jnp.dot(onehot, emb_ref[...], preferred_element_type=jnp.float32)
        x = x + pe_ref[...]                                          # (BS, D)

        # ---- ResBlocks, fully unrolled (static layer count), all data in VMEM/vregs ----
        for l in range(n_layers):
            w1, b1, w2, b2, gamma, beta = layer_refs[6 * l: 6 * (l + 1)]

            # linear1 (D -> 2*dff): one matmul, GLU split at dff (lane-aligned, 128)
            h = jnp.dot(x, w1[...], preferred_element_type=jnp.float32) + b1[...]
            h = h[:, :dff] * jax.nn.sigmoid(h[:, dff:])

            # linear2 (dff -> 2*D): ONE fused matmul + one bias add;
            # GLU halves recovered with static in-vreg lane slices (2*D = 64 <= 128 lanes).
            y2 = jnp.dot(h, w2[...], preferred_element_type=jnp.float32) + b2[...]
            y = y2[:, :D] * jax.nn.sigmoid(y2[:, D:])

            # residual + LayerNorm(d_model), eps = 1e-5 (PyTorch default)
            z = y + x
            mu = jnp.mean(z, axis=-1, keepdims=True)
            var = jnp.mean(jnp.square(z - mu), axis=-1, keepdims=True)
            x = (z - mu) * jax.lax.rsqrt(var + 1e-5) * gamma[...] + beta[...]

        # ---- mean over the sequence axis: unrolled, sublane-aligned strided sums ----
        rows = [jnp.mean(x[b * S:(b + 1) * S, :], axis=0, keepdims=True)
                for b in range(B)]
        o_ref[...] = jnp.concatenate(rows, axis=0).astype(o_ref.dtype)

    return kernel


def categorical_encoder_pallas(tokens, emb, layers, pe_table):
    B, S = tokens.shape
    V, D = emb.shape
    dff = layers[0][0].shape[1] // 2
    n_layers = len(layers)

    # Pad the vocab axis to a lane-friendly multiple so the one-hot gather matmul
    # has an aligned contraction dim (padded rows are zeros and never selected).
    v_pad = int(pl.cdiv(V, 128) * 128)
    emb_pad = jnp.pad(emb.astype(jnp.float32), ((0, v_pad - V), (0, 0)))

    tok2d = tokens.reshape(B * S, 1).astype(jnp.int32)
    pe_full = jnp.tile(pe_table[:S], (B, 1)).astype(jnp.float32)     # (B*S, D)

    flat_params = [p for layer in layers for p in layer]

    # Single invocation, no grid -> no pipelining / double-buffering: whole-array
    # VMEM residency for tokens, PE, embedding table, and all weights (< 1 MiB total).
    vmem = pl.BlockSpec(memory_space=pltpu.MemorySpace.VMEM)

    kernel = make_encoder_kernel(n_layers, B, S, D, dff, v_pad)
    return pl.pallas_call(
        kernel,
        out_shape=jax.ShapeDtypeStruct((B, D), jnp.float32),
        in_specs=[vmem] * (3 + len(flat_params)),
        out_specs=vmem,
    )(tok2d, pe_full, emb_pad, *flat_params)


# ------------------------------ glue (plain JAX / numpy) ------------------------------

def sinusoidal_pe(seq_len, d_model):
    pos = np.arange(seq_len, dtype=np.float32)[:, None]
    div = np.exp(np.arange(0, d_model, 2, dtype=np.float32)
                 * (-np.log(10000.0) / d_model))
    pe = np.zeros((seq_len, d_model), np.float32)
    pe[:, 0::2] = np.sin(pos * div)
    pe[:, 1::2] = np.cos(pos * div)
    return jnp.asarray(pe)


def init_params(key, vocab, d_model, d_ff, n_layers):
    keys = jax.random.split(key, 1 + n_layers)
    emb = jax.random.normal(keys[0], (vocab, d_model), jnp.float32) * 0.02
    layers = []
    for l in range(n_layers):
        k = jax.random.split(keys[1 + l], 4)
        w1 = jax.random.normal(k[0], (d_model, 2 * d_ff), jnp.float32) * 0.02
        b1 = jax.random.normal(k[1], (2 * d_ff,), jnp.float32) * 0.02
        w2 = jax.random.normal(k[2], (d_ff, 2 * d_model), jnp.float32) * 0.02
        b2 = jax.random.normal(k[3], (2 * d_model,), jnp.float32) * 0.02
        gamma = jnp.ones((d_model,), jnp.float32)
        beta = jnp.zeros((d_model,), jnp.float32)
        layers.append((
            w1, b1[None, :],          # linear1 kept whole (lane-aligned GLU split at dff)
            w2, b2[None, :],          # linear2 kept whole (fused matmul, in-vreg GLU split)
            gamma[None, :], beta[None, :],   # LayerNorm affine
        ))
    return emb, layers


def reference_forward(tokens, emb, layers, pe_table):
    x = jnp.take(emb, tokens, axis=0) + pe_table[None, :tokens.shape[1], :]
    for (w1, b1, w2, b2, g, bb) in layers:
        dff = w1.shape[1] // 2
        d = w2.shape[1] // 2
        h = x @ w1 + b1
        h = h[..., :dff] * jax.nn.sigmoid(h[..., dff:])
        y2 = h @ w2 + b2
        y = y2[..., :d] * jax.nn.sigmoid(y2[..., d:])
        z = y + x
        mu = z.mean(-1, keepdims=True)
        var = ((z - mu) ** 2).mean(-1, keepdims=True)
        x = (z - mu) / jnp.sqrt(var + 1e-5) * g + bb
    return x.mean(axis=1)


# ------------------------------ main ------------------------------

if __name__ == "__main__":
    # config: d_model=32, d_ff_mult=4 -> d_ff=128, dropout=0.0, field_encoder_layers=2
    B, S, D, DFF, LAYERS, VOCAB = 2, 8, 32, 128, 2, 50

    key = jax.random.PRNGKey(0)
    k_tok, k_par = jax.random.split(key)
    tokens = jax.random.randint(k_tok, (B, S), 0, VOCAB, dtype=jnp.int32)

    emb, layers = init_params(k_par, VOCAB, D, DFF, LAYERS)
    pe_table = sinusoidal_pe(S, D)

    out = categorical_encoder_pallas(tokens, emb, layers, pe_table)
    out = jax.block_until_ready(out)

    ref = reference_forward(tokens, emb, layers, pe_table)
    assert out.shape == (B, D)
    np.testing.assert_allclose(np.asarray(out), np.asarray(ref), rtol=1e-4, atol=1e-5)

    print("KERNEL_OK")
</pallas_src>

<mosaic_0001>
module attributes {stable_mosaic.version = 11 : i64} {
  func.func @kernel(%arg0: memref<16x1xi32, #tpu.memory_space<vmem>>, %arg1: memref<16x32xf32, #tpu.memory_space<vmem>>, %arg2: memref<128x32xf32, #tpu.memory_space<vmem>>, %arg3: memref<32x256xf32, #tpu.memory_space<vmem>>, %arg4: memref<1x256xf32, #tpu.memory_space<vmem>>, %arg5: memref<128x64xf32, #tpu.memory_space<vmem>>, %arg6: memref<1x64xf32, #tpu.memory_space<vmem>>, %arg7: memref<1x32xf32, #tpu.memory_space<vmem>>, %arg8: memref<1x32xf32, #tpu.memory_space<vmem>>, %arg9: memref<32x256xf32, #tpu.memory_space<vmem>>, %arg10: memref<1x256xf32, #tpu.memory_space<vmem>>, %arg11: memref<128x64xf32, #tpu.memory_space<vmem>>, %arg12: memref<1x64xf32, #tpu.memory_space<vmem>>, %arg13: memref<1x32xf32, #tpu.memory_space<vmem>>, %arg14: memref<1x32xf32, #tpu.memory_space<vmem>>, %arg15: memref<2x32xf32, #tpu.memory_space<vmem>>) attributes {dimension_semantics = [], scalar_prefetch = 0 : i64, scratch_operands = 0 : i64, tpu.core_type = #tpu.core_type<tc>} {
    %c0 = arith.constant 0 : index
    %c0_0 = arith.constant 0 : index
    %0 = vector.load %arg0[%c0, %c0_0] : memref<16x1xi32, #tpu.memory_space<vmem>>, vector<16x1xi32>
    %1 = tpu.iota {dimensions = array<i32: 1>} : vector<16x128xi32>
    %2 = vector.broadcast %0 : vector<16x1xi32> to vector<16x128xi32>
    %3 = arith.cmpi eq, %1, %2 : vector<16x128xi32>
    %4 = arith.extui %3 : vector<16x128xi1> to vector<16x128xi32>
    %5 = arith.sitofp %4 : vector<16x128xi32> to vector<16x128xf32>
    %c0_1 = arith.constant 0 : index
    %c0_2 = arith.constant 0 : index
    %6 = vector.load %arg2[%c0_1, %c0_2] : memref<128x32xf32, #tpu.memory_space<vmem>>, vector<128x32xf32>
    %cst = arith.constant dense<0.000000e+00> : vector<16x32xf32>
    %7 = tpu.matmul %5, %6, %cst {dimension_numbers = #tpu.dot_dimension_numbers<[1], [0], [0], [1], [0, 0, 1, 1], [], []>} : vector<16x128xf32>, vector<128x32xf32>, vector<16x32xf32> -> vector<16x32xf32>
    %c0_3 = arith.constant 0 : index
    %c0_4 = arith.constant 0 : index
    %8 = vector.load %arg1[%c0_3, %c0_4] : memref<16x32xf32, #tpu.memory_space<vmem>>, vector<16x32xf32>
    %9 = arith.addf %7, %8 : vector<16x32xf32>
    %c0_5 = arith.constant 0 : index
    %c0_6 = arith.constant 0 : index
    %10 = vector.load %arg3[%c0_5, %c0_6] : memref<32x256xf32, #tpu.memory_space<vmem>>, vector<32x256xf32>
    %cst_7 = arith.constant dense<0.000000e+00> : vector<16x256xf32>
    %11 = tpu.matmul %9, %10, %cst_7 {dimension_numbers = #tpu.dot_dimension_numbers<[1], [0], [0], [1], [0, 0, 1, 1], [], []>} : vector<16x32xf32>, vector<32x256xf32>, vector<16x256xf32> -> vector<16x256xf32>
    %c0_8 = arith.constant 0 : index
    %c0_9 = arith.constant 0 : index
    %12 = vector.load %arg4[%c0_8, %c0_9] : memref<1x256xf32, #tpu.memory_space<vmem>>, vector<1x256xf32>
    %13 = vector.broadcast %12 : vector<1x256xf32> to vector<16x256xf32>
    %14 = arith.addf %11, %13 : vector<16x256xf32>
    %15 = vector.extract_strided_slice %14 {offsets = [0, 0], sizes = [16, 128], strides = [1, 1]} : vector<16x256xf32> to vector<16x128xf32>
    %16 = vector.extract_strided_slice %14 {offsets = [0, 128], sizes = [16, 128], strides = [1, 1]} : vector<16x256xf32> to vector<16x128xf32>
    %17 = arith.negf %16 : vector<16x128xf32>
    %18 = math.exp %17 : vector<16x128xf32>
    %cst_10 = arith.constant 1.000000e+00 : f32
    %19 = vector.broadcast %cst_10 : f32 to vector<16x128xf32>
    %20 = arith.addf %19, %18 : vector<16x128xf32>
    %21 = arith.divf %19, %20 : vector<16x128xf32>
    %22 = arith.mulf %15, %21 : vector<16x128xf32>
    %c0_11 = arith.constant 0 : index
    %c0_12 = arith.constant 0 : index
    %23 = vector.load %arg5[%c0_11, %c0_12] : memref<128x64xf32, #tpu.memory_space<vmem>>, vector<128x64xf32>
    %cst_13 = arith.constant dense<0.000000e+00> : vector<16x64xf32>
    %24 = tpu.matmul %22, %23, %cst_13 {dimension_numbers = #tpu.dot_dimension_numbers<[1], [0], [0], [1], [0, 0, 1, 1], [], []>} : vector<16x128xf32>, vector<128x64xf32>, vector<16x64xf32> -> vector<16x64xf32>
    %c0_14 = arith.constant 0 : index
    %c0_15 = arith.constant 0 : index
    %25 = vector.load %arg6[%c0_14, %c0_15] : memref<1x64xf32, #tpu.memory_space<vmem>>, vector<1x64xf32>
    %26 = vector.broadcast %25 : vector<1x64xf32> to vector<16x64xf32>
    %27 = arith.addf %24, %26 : vector<16x64xf32>
    %28 = vector.extract_strided_slice %27 {offsets = [0, 0], sizes = [16, 32], strides = [1, 1]} : vector<16x64xf32> to vector<16x32xf32>
    %29 = vector.extract_strided_slice %27 {offsets = [0, 32], sizes = [16, 32], strides = [1, 1]} : vector<16x64xf32> to vector<16x32xf32>
    %30 = arith.negf %29 : vector<16x32xf32>
    %31 = math.exp %30 : vector<16x32xf32>
    %cst_16 = arith.constant 1.000000e+00 : f32
    %32 = vector.broadcast %cst_16 : f32 to vector<16x32xf32>
    %33 = arith.addf %32, %31 : vector<16x32xf32>
    %34 = arith.divf %32, %33 : vector<16x32xf32>
    %35 = arith.mulf %28, %34 : vector<16x32xf32>
    %36 = arith.addf %35, %9 : vector<16x32xf32>
    %cst_17 = arith.constant dense<0.000000e+00> : vector<16xf32>
    %37 = vector.multi_reduction <add>, %36, %cst_17 [1] : vector<16x32xf32> to vector<16xf32>
    %38 = vector.shape_cast %37 : vector<16xf32> to vector<16x1xf32>
    %cst_18 = arith.constant 3.200000e+01 : f32
    %39 = vector.broadcast %cst_18 : f32 to vector<16x1xf32>
    %40 = arith.divf %38, %39 : vector<16x1xf32>
    %41 = vector.broadcast %40 : vector<16x1xf32> to vector<16x32xf32>
    %42 = arith.subf %36, %41 : vector<16x32xf32>
    %43 = arith.mulf %42, %42 : vector<16x32xf32>
    %cst_19 = arith.constant dense<0.000000e+00> : vector<16xf32>
    %44 = vector.multi_reduction <add>, %43, %cst_19 [1] : vector<16x32xf32> to vector<16xf32>
    %45 = vector.shape_cast %44 : vector<16xf32> to vector<16x1xf32>
    %cst_20 = arith.constant 3.200000e+01 : f32
    %46 = vector.broadcast %cst_20 : f32 to vector<16x1xf32>
    %47 = arith.divf %45, %46 : vector<16x1xf32>
    %48 = vector.broadcast %40 : vector<16x1xf32> to vector<16x32xf32>
    %49 = arith.subf %36, %48 : vector<16x32xf32>
    %cst_21 = arith.constant 9.99999974E-6 : f32
    %50 = vector.broadcast %cst_21 : f32 to vector<16x1xf32>
    %51 = arith.addf %47, %50 : vector<16x1xf32>
    %52 = math.rsqrt %51 : vector<16x1xf32>
    %53 = vector.broadcast %52 : vector<16x1xf32> to vector<16x32xf32>
    %54 = arith.mulf %49, %53 : vector<16x32xf32>
    %c0_22 = arith.constant 0 : index
    %c0_23 = arith.constant 0 : index
    %55 = vector.load %arg7[%c0_22, %c0_23] : memref<1x32xf32, #tpu.memory_space<vmem>>, vector<1x32xf32>
    %56 = vector.broadcast %55 : vector<1x32xf32> to vector<16x32xf32>
    %57 = arith.mulf %54, %56 : vector<16x32xf32>
    %c0_24 = arith.constant 0 : index
    %c0_25 = arith.constant 0 : index
    %58 = vector.load %arg8[%c0_24, %c0_25] : memref<1x32xf32, #tpu.memory_space<vmem>>, vector<1x32xf32>
    %59 = vector.broadcast %58 : vector<1x32xf32> to vector<16x32xf32>
    %60 = arith.addf %57, %59 : vector<16x32xf32>
    %c0_26 = arith.constant 0 : index
    %c0_27 = arith.constant 0 : index
    %61 = vector.load %arg9[%c0_26, %c0_27] : memref<32x256xf32, #tpu.memory_space<vmem>>, vector<32x256xf32>
    %cst_28 = arith.constant dense<0.000000e+00> : vector<16x256xf32>
    %62 = tpu.matmul %60, %61, %cst_28 {dimension_numbers = #tpu.dot_dimension_numbers<[1], [0], [0], [1], [0, 0, 1, 1], [], []>} : vector<16x32xf32>, vector<32x256xf32>, vector<16x256xf32> -> vector<16x256xf32>
    %c0_29 = arith.constant 0 : index
    %c0_30 = arith.constant 0 : index
    %63 = vector.load %arg10[%c0_29, %c0_30] : memref<1x256xf32, #tpu.memory_space<vmem>>, vector<1x256xf32>
    %64 = vector.broadcast %63 : vector<1x256xf32> to vector<16x256xf32>
    %65 = arith.addf %62, %64 : vector<16x256xf32>
    %66 = vector.extract_strided_slice %65 {offsets = [0, 0], sizes = [16, 128], strides = [1, 1]} : vector<16x256xf32> to vector<16x128xf32>
    %67 = vector.extract_strided_slice %65 {offsets = [0, 128], sizes = [16, 128], strides = [1, 1]} : vector<16x256xf32> to vector<16x128xf32>
    %68 = arith.negf %67 : vector<16x128xf32>
    %69 = math.exp %68 : vector<16x128xf32>
    %cst_31 = arith.constant 1.000000e+00 : f32
    %70 = vector.broadcast %cst_31 : f32 to vector<16x128xf32>
    %71 = arith.addf %70, %69 : vector<16x128xf32>
    %72 = arith.divf %70, %71 : vector<16x128xf32>
    %73 = arith.mulf %66, %72 : vector<16x128xf32>
    %c0_32 = arith.constant 0 : index
    %c0_33 = arith.constant 0 : index
    %74 = vector.load %arg11[%c0_32, %c0_33] : memref<128x64xf32, #tpu.memory_space<vmem>>, vector<128x64xf32>
    %cst_34 = arith.constant dense<0.000000e+00> : vector<16x64xf32>
    %75 = tpu.matmul %73, %74, %cst_34 {dimension_numbers = #tpu.dot_dimension_numbers<[1], [0], [0], [1], [0, 0, 1, 1], [], []>} : vector<16x128xf32>, vector<128x64xf32>, vector<16x64xf32> -> vector<16x64xf32>
    %c0_35 = arith.constant 0 : index
    %c0_36 = arith.constant 0 : index
    %76 = vector.load %arg12[%c0_35, %c0_36] : memref<1x64xf32, #tpu.memory_space<vmem>>, vector<1x64xf32>
    %77 = vector.broadcast %76 : vector<1x64xf32> to vector<16x64xf32>
    %78 = arith.addf %75, %77 : vector<16x64xf32>
    %79 = vector.extract_strided_slice %78 {offsets = [0, 0], sizes = [16, 32], strides = [1, 1]} : vector<16x64xf32> to vector<16x32xf32>
    %80 = vector.extract_strided_slice %78 {offsets = [0, 32], sizes = [16, 32], strides = [1, 1]} : vector<16x64xf32> to vector<16x32xf32>
    %81 = arith.negf %80 : vector<16x32xf32>
    %82 = math.exp %81 : vector<16x32xf32>
    %cst_37 = arith.constant 1.000000e+00 : f32
    %83 = vector.broadcast %cst_37 : f32 to vector<16x32xf32>
    %84 = arith.addf %83, %82 : vector<16x32xf32>
    %85 = arith.divf %83, %84 : vector<16x32xf32>
    %86 = arith.mulf %79, %85 : vector<16x32xf32>
    %87 = arith.addf %86, %60 : vector<16x32xf32>
    %cst_38 = arith.constant dense<0.000000e+00> : vector<16xf32>
    %88 = vector.multi_reduction <add>, %87, %cst_38 [1] : vector<16x32xf32> to vector<16xf32>
    %89 = vector.shape_cast %88 : vector<16xf32> to vector<16x1xf32>
    %cst_39 = arith.constant 3.200000e+01 : f32
    %90 = vector.broadcast %cst_39 : f32 to vector<16x1xf32>
    %91 = arith.divf %89, %90 : vector<16x1xf32>
    %92 = vector.broadcast %91 : vector<16x1xf32> to vector<16x32xf32>
    %93 = arith.subf %87, %92 : vector<16x32xf32>
    %94 = arith.mulf %93, %93 : vector<16x32xf32>
    %cst_40 = arith.constant dense<0.000000e+00> : vector<16xf32>
    %95 = vector.multi_reduction <add>, %94, %cst_40 [1] : vector<16x32xf32> to vector<16xf32>
    %96 = vector.shape_cast %95 : vector<16xf32> to vector<16x1xf32>
    %cst_41 = arith.constant 3.200000e+01 : f32
    %97 = vector.broadcast %cst_41 : f32 to vector<16x1xf32>
    %98 = arith.divf %96, %97 : vector<16x1xf32>
    %99 = vector.broadcast %91 : vector<16x1xf32> to vector<16x32xf32>
    %100 = arith.subf %87, %99 : vector<16x32xf32>
    %cst_42 = arith.constant 9.99999974E-6 : f32
    %101 = vector.broadcast %cst_42 : f32 to vector<16x1xf32>
    %102 = arith.addf %98, %101 : vector<16x1xf32>
    %103 = math.rsqrt %102 : vector<16x1xf32>
    %104 = vector.broadcast %103 : vector<16x1xf32> to vector<16x32xf32>
    %105 = arith.mulf %100, %104 : vector<16x32xf32>
    %c0_43 = arith.constant 0 : index
    %c0_44 = arith.constant 0 : index
    %106 = vector.load %arg13[%c0_43, %c0_44] : memref<1x32xf32, #tpu.memory_space<vmem>>, vector<1x32xf32>
    %107 = vector.broadcast %106 : vector<1x32xf32> to vector<16x32xf32>
    %108 = arith.mulf %105, %107 : vector<16x32xf32>
    %c0_45 = arith.constant 0 : index
    %c0_46 = arith.constant 0 : index
    %109 = vector.load %arg14[%c0_45, %c0_46] : memref<1x32xf32, #tpu.memory_space<vmem>>, vector<1x32xf32>
    %110 = vector.broadcast %109 : vector<1x32xf32> to vector<16x32xf32>
    %111 = arith.addf %108, %110 : vector<16x32xf32>
    %112 = vector.extract_strided_slice %111 {offsets = [0, 0], sizes = [8, 32], strides = [1, 1]} : vector<16x32xf32> to vector<8x32xf32>
    %cst_47 = arith.constant dense<0.000000e+00> : vector<32xf32>
    %113 = vector.multi_reduction <add>, %112, %cst_47 [0] : vector<8x32xf32> to vector<32xf32>
    %114 = vector.shape_cast %113 : vector<32xf32> to vector<1x32xf32>
    %cst_48 = arith.constant 8.000000e+00 : f32
    %115 = vector.broadcast %cst_48 : f32 to vector<1x32xf32>
    %116 = arith.divf %114, %115 : vector<1x32xf32>
    %117 = vector.extract_strided_slice %111 {offsets = [8, 0], sizes = [8, 32], strides = [1, 1]} : vector<16x32xf32> to vector<8x32xf32>
    %cst_49 = arith.constant dense<0.000000e+00> : vector<32xf32>
    %118 = vector.multi_reduction <add>, %117, %cst_49 [0] : vector<8x32xf32> to vector<32xf32>
    %119 = vector.shape_cast %118 : vector<32xf32> to vector<1x32xf32>
    %cst_50 = arith.constant 8.000000e+00 : f32
    %120 = vector.broadcast %cst_50 : f32 to vector<1x32xf32>
    %121 = arith.divf %119, %120 : vector<1x32xf32>
    %122 = tpu.concatenate %116, %121 in 0 : vector<1x32xf32>, vector<1x32xf32> -> vector<2x32xf32>
    %c0_51 = arith.constant 0 : index
    %c0_52 = arith.constant 0 : index
    %123 = vector.load %arg15[%c0_51, %c0_52] : memref<2x32xf32, #tpu.memory_space<vmem>>, vector<2x32xf32>
    tpu.vector_store %arg15[%c0_51, %c0_52], %122 {strides = array<i32>} : memref<2x32xf32, #tpu.memory_space<vmem>>, vector<2x32xf32>,
    return
  }
}

</mosaic_0001>

<llo_original>
// kernel: tpu_custom_call.1
$region0: #{tpu_custom_call.1}
  #allocation0 [shape = 'u32[]', space=smem, size = 0x4, offset = 0x4, fixed_abs, tag = 'smem constant byte address 0x4 - core index']
  #allocation1 [shape = 'u32[144,128]{1,0:T(1,128)}', space=vmem, size = 0x12000, scoped, tag = 'internal scratch']
  %s0 = inlined_call_operand.vmem [shape: s32[16,1], index: 0, kind: input, shape index: {}]
  %s1 = inlined_call_operand.vmem [shape: f32[16,32], index: 1, kind: input, shape index: {}]
  %s2 = inlined_call_operand.vmem [shape: f32[128,32], index: 2, kind: input, shape index: {}]
  %s3 = inlined_call_operand.vmem [shape: f32[32,256], index: 3, kind: input, shape index: {}]
  %s4 = inlined_call_operand.vmem [shape: f32[1,256], index: 4, kind: input, shape index: {}]
  %s5 = inlined_call_operand.vmem [shape: f32[128,64], index: 5, kind: input, shape index: {}]
  %s6 = inlined_call_operand.vmem [shape: f32[1,64], index: 6, kind: input, shape index: {}]
  %s7 = inlined_call_operand.vmem [shape: f32[1,32], index: 7, kind: input, shape index: {}]
  %s8 = inlined_call_operand.vmem [shape: f32[1,32], index: 8, kind: input, shape index: {}]
  %s9 = inlined_call_operand.vmem [shape: f32[32,256], index: 9, kind: input, shape index: {}]
  %s10 = inlined_call_operand.vmem [shape: f32[1,256], index: 10, kind: input, shape index: {}]
  %s11 = inlined_call_operand.vmem [shape: f32[128,64], index: 11, kind: input, shape index: {}]
  %s12 = inlined_call_operand.vmem [shape: f32[1,64], index: 12, kind: input, shape index: {}]
  %s13 = inlined_call_operand.vmem [shape: f32[1,32], index: 13, kind: input, shape index: {}]
  %s14 = inlined_call_operand.vmem [shape: f32[1,32], index: 14, kind: input, shape index: {}]
  %s15 = inlined_call_operand.hbm [shape: f32[2,32], index: 15, kind: output, shape index: {}]
  %s16 = sld [smem:[#allocation0]]
  $region70: #{tpu_custom_call.1} parent=0
    _
  %s18 = ssub.s32 1, %s16
  %s19 = scalar_select 0, %s18, %s16
  $region1: #{tpu_custom_call.1} parent=0
    #allocation2 [shape = 'u8[1024]{0}', space=vmem, size = 0x400, scoped, tag = 'output window, operand 0, single buffered']
    #allocation3 [shape = 's32[1]{0}', space=sflag, size = 0x4, scoped, tag = 'scoped memory for tpu_custom_call.1']
    %20 = vsyncpa [#allocation3], 0
    // Predicated region
    $region2: #{tpu_custom_call.1} parent=1 // pred_check
      _
    $region3: #{tpu_custom_call.1} parent=1 // pred_check_branch
      %22 = sbr.rel (0) target = $region5
    $region4: #{tpu_custom_call.1} parent=1 // pred_region
      _
    $region5: #{tpu_custom_call.1} parent=1 // pred_fallthru
      _
    // Predicated region
    $region6: #{tpu_custom_call.1} parent=1 // pred_check
      _
    $region7: #{tpu_custom_call.1} parent=1 // pred_check_branch
      %24 = sbr.rel (0) target = $region9
    $region8: #{tpu_custom_call.1} parent=1 // pred_region
      _
    $region9: #{tpu_custom_call.1} parent=1 // pred_fallthru
      _
    // Predicated region
    $region10: #{tpu_custom_call.1} parent=1 // pred_check
      _
    $region11: #{tpu_custom_call.1} parent=1 // pred_check_branch
      %26 = sbr.rel (0) target = $region13
    $region12: #{tpu_custom_call.1} parent=1 // pred_region
      _
    $region13: #{tpu_custom_call.1} parent=1 // pred_fallthru
      _
    // Predicated region
    $region14: #{tpu_custom_call.1} parent=1 // pred_check
      _
    $region15: #{tpu_custom_call.1} parent=1 // pred_check_branch
      %28 = sbr.rel (0) target = $region17
    $region16: #{tpu_custom_call.1} parent=1 // pred_region
      _
    $region17: #{tpu_custom_call.1} parent=1 // pred_fallthru
      _
    // Predicated region
    $region18: #{tpu_custom_call.1} parent=1 // pred_check
      _
    $region19: #{tpu_custom_call.1} parent=1 // pred_check_branch
      %30 = sbr.rel (0) target = $region21
    $region20: #{tpu_custom_call.1} parent=1 // pred_region
      _
    $region21: #{tpu_custom_call.1} parent=1 // pred_fallthru
      _
    // Predicated region
    $region22: #{tpu_custom_call.1} parent=1 // pred_check
      _
    $region23: #{tpu_custom_call.1} parent=1 // pred_check_branch
      %32 = sbr.rel (0) target = $region25
    $region24: #{tpu_custom_call.1} parent=1 // pred_region
      _
    $region25: #{tpu_custom_call.1} parent=1 // pred_fallthru
      _
    // Predicated region
    $region26: #{tpu_custom_call.1} parent=1 // pred_check
      _
    $region27: #{tpu_custom_call.1} parent=1 // pred_check_branch
      %34 = sbr.rel (0) target = $region29
    $region28: #{tpu_custom_call.1} parent=1 // pred_region
      _
    $region29: #{tpu_custom_call.1} parent=1 // pred_fallthru
      _
    // Predicated region
    $region30: #{tpu_custom_call.1} parent=1 // pred_check
      _
    $region31: #{tpu_custom_call.1} parent=1 // pred_check_branch
      %36 = sbr.rel (0) target = $region33
    $region32: #{tpu_custom_call.1} parent=1 // pred_region
      _
    $region33: #{tpu_custom_call.1} parent=1 // pred_fallthru
      _
    // Predicated region
    $region34: #{tpu_custom_call.1} parent=1 // pred_check
      _
    $region35: #{tpu_custom_call.1} parent=1 // pred_check_branch
      %38 = sbr.rel (0) target = $region37
    $region36: #{tpu_custom_call.1} parent=1 // pred_region
      _
    $region37: #{tpu_custom_call.1} parent=1 // pred_fallthru
      _
    // Predicated region
    $region38: #{tpu_custom_call.1} parent=1 // pred_check
      _
    $region39: #{tpu_custom_call.1} parent=1 // pred_check_branch
      %40 = sbr.rel (0) target = $region41
    $region40: #{tpu_custom_call.1} parent=1 // pred_region
      _
    $region41: #{tpu_custom_call.1} parent=1 // pred_fallthru
      _
    // Predicated region
    $region42: #{tpu_custom_call.1} parent=1 // pred_check
      _
    $region43: #{tpu_custom_call.1} parent=1 // pred_check_branch
      %42 = sbr.rel (0) target = $region45
    $region44: #{tpu_custom_call.1} parent=1 // pred_region
      _
    $region45: #{tpu_custom_call.1} parent=1 // pred_fallthru
      _
    // Predicated region
    $region46: #{tpu_custom_call.1} parent=1 // pred_check
      _
    $region47: #{tpu_custom_call.1} parent=1 // pred_check_branch
      %44 = sbr.rel (0) target = $region49
    $region48: #{tpu_custom_call.1} parent=1 // pred_region
      _
    $region49: #{tpu_custom_call.1} parent=1 // pred_fallthru
      _
    // Predicated region
    $region50: #{tpu_custom_call.1} parent=1 // pred_check
      _
    $region51: #{tpu_custom_call.1} parent=1 // pred_check_branch
      %46 = sbr.rel (0) target = $region53
    $region52: #{tpu_custom_call.1} parent=1 // pred_region
      _
    $region53: #{tpu_custom_call.1} parent=1 // pred_fallthru
      _
    // Predicated region
    $region54: #{tpu_custom_call.1} parent=1 // pred_check
      _
    $region55: #{tpu_custom_call.1} parent=1 // pred_check_branch
      %48 = sbr.rel (0) target = $region57
    $region56: #{tpu_custom_call.1} parent=1 // pred_region
      _
    $region57: #{tpu_custom_call.1} parent=1 // pred_fallthru
      _
    // Predicated region
    $region58: #{tpu_custom_call.1} parent=1 // pred_check
      _
    $region59: #{tpu_custom_call.1} parent=1 // pred_check_branch
      %50 = sbr.rel (0) target = $region61
    $region60: #{tpu_custom_call.1} parent=1 // pred_region
      _
    $region61: #{tpu_custom_call.1} parent=1 // pred_fallthru
      _
    %v51 = vld [vmem:[%s0] sm:$0xff]
    %v52 = vld [vmem:[%s0 + $0x8] sm:$0xff]
    %v53 = vlaneseq
    %v54 = vand.u32 %v53, 127
    %55 = vset.pattern.permute.xlu0 0
    %56 = vperm.xlu0 %55, %v51
    %v57 = vpop.permute.xlu0 %56
    %58 = vset.pattern.permute.xlu0 0
    %59 = vperm.xlu0 %58, %v52
    %v60 = vpop.permute.xlu0 %59
    %vm61 = vcmp.eq.s32.totalorder %v54, %v57
    %vm62 = vcmp.eq.s32.totalorder %v54, %v60
    %v63 = vsel %vm61, 1, 0
    %v64 = vsel %vm62, 1, 0
    %v65 = vcvt.s32.f32 %v63
    %v66 = vcvt.s32.f32 %v64
    %v67 = vld [vmem:[%s2] sm:$0xff]
    %v68 = vld [vmem:[%s2 + $0x8] sm:$0xff]
    %v69 = vld [vmem:[%s2 + $0x10] sm:$0xff]
    %v70 = vld [vmem:[%s2 + $0x18] sm:$0xff]
    %v71 = vld [vmem:[%s2 + $0x20] sm:$0xff]
    %v72 = vld [vmem:[%s2 + $0x28] sm:$0xff]
    %v73 = vld [vmem:[%s2 + $0x30] sm:$0xff]
    %v74 = vld [vmem:[%s2 + $0x38] sm:$0xff]
    %v75 = vld [vmem:[%s2 + $0x40] sm:$0xff]
    %v76 = vld [vmem:[%s2 + $0x48] sm:$0xff]
    %v77 = vld [vmem:[%s2 + $0x50] sm:$0xff]
    %v78 = vld [vmem:[%s2 + $0x58] sm:$0xff]
    %v79 = vld [vmem:[%s2 + $0x60] sm:$0xff]
    %v80 = vld [vmem:[%s2 + $0x68] sm:$0xff]
    %v81 = vld [vmem:[%s2 + $0x70] sm:$0xff]
    %v82 = vld [vmem:[%s2 + $0x78] sm:$0xff]
    %v83 = vld [vmem:[%s1] sm:$0xff]
    %v84 = vld [vmem:[%s1 + $0x8] sm:$0xff]
    %85 = vmatprep.subr.mxu0 0.0
    %86 = vmatpush1.msra.mxu0 %v82
    %87 = vmatprep.subr.mxu0 0.0
    %88 = vmatpush1.msra.mxu0 %v81
    %89 = vmatprep.subr.mxu0 0.0
    %90 = vmatpush1.msra.mxu0 %v80
    %91 = vmatprep.subr.mxu0 0.0
    %92 = vmatpush1.msra.mxu0 %v79
    %93 = vmatprep.subr.mxu0 0.0
    %94 = vmatpush1.msra.mxu0 %v78
    %95 = vmatprep.subr.mxu0 0.0
    %96 = vmatpush1.msra.mxu0 %v77
    %97 = vmatprep.subr.mxu0 0.0
    %98 = vmatpush1.msra.mxu0 %v76
    %99 = vmatprep.subr.mxu0 0.0
    %100 = vmatpush1.msra.mxu0 %v75
    %101 = vmatprep.subr.mxu0 0.0
    %102 = vmatpush1.msra.mxu0 %v74
    %103 = vmatprep.subr.mxu0 0.0
    %104 = vmatpush1.msra.mxu0 %v73
    %105 = vmatprep.subr.mxu0 0.0
    %106 = vmatpush1.msra.mxu0 %v72
    %107 = vmatprep.subr.mxu0 0.0
    %108 = vmatpush1.msra.mxu0 %v71
    %109 = vmatprep.subr.mxu0 0.0
    %110 = vmatpush1.msra.mxu0 %v70
    %111 = vmatprep.subr.mxu0 0.0
    %112 = vmatpush1.msra.mxu0 %v69
    %113 = vmatprep.subr.mxu0 0.0
    %114 = vmatpush1.msra.mxu0 %v68
    %115 = vmatprep.subr.mxu0 0.0
    %116 = vmatpush1.msra.mxu0 %v67
    %117 = vmatprep.subr.mxu0 0.0
    %118 = vmatpush2.msra.mxu0 0.0
    %119 = vmatprep.subr.mxu0 0.0
    %120 = vmatpush2.msra.mxu0 0.0
    %121 = vmatprep.subr.mxu0 0.0
    %122 = vmatpush2.msra.mxu0 0.0
    %123 = vmatprep.subr.mxu0 0.0
    %124 = vmatpush2.msra.mxu0 0.0
    %125 = vmatprep.subr.mxu0 0.0
    %126 = vmatpush2.msra.mxu0 0.0
    %127 = vmatprep.subr.mxu0 0.0
    %128 = vmatpush2.msra.mxu0 0.0
    %129 = vmatprep.subr.mxu0 0.0
    %130 = vmatpush2.msra.mxu0 0.0
    %131 = vmatprep.subr.mxu0 0.0
    %132 = vmatpush2.msra.mxu0 0.0
    %133 = vmatprep.subr.mxu0 0.0
    %134 = vmatpush2.msra.mxu0 0.0
    %135 = vmatprep.subr.mxu0 0.0
    %136 = vmatpush2.msra.mxu0 0.0
    %137 = vmatprep.subr.mxu0 0.0
    %138 = vmatpush2.msra.mxu0 0.0
    %139 = vmatprep.subr.mxu0 0.0
    %140 = vmatpush2.msra.mxu0 0.0
    %141 = vmatprep.subr.mxu0 0.0
    %142 = vmatpush2.msra.mxu0 0.0
    %143 = vmatprep.subr.mxu0 0.0
    %144 = vmatpush2.msra.mxu0 0.0
    %145 = vmatprep.subr.mxu0 0.0
    %146 = vmatpush2.msra.mxu0 0.0
    %147 = vmatprep.subr.mxu0 0.0
    %148 = vmatpush2.msra.mxu0 0.0
    %149 = vmatprep.mubr.f32.mxu0 0.0
    %150 = vmatmul.mubr.f32.gmra.mxu0 %v65
    %v151 = vpop.f32.mrf.mxu0
    %v152 = vadd.f32 %v83, %v151
    %v153 = vpop.f32.mrf.mxu0
    %154 = vmatprep.mubr.f32.mxu0 0.0
    %155 = vmatmul.mubr.f32.gmra.mxu0 %v66
    %v156 = vpop.f32.mrf.mxu0
    %v157 = vadd.f32 %v84, %v156
    %v158 = vpop.f32.mrf.mxu0
    %159 = vdwg.mxu0
    %v160 = vld [vmem:[%s3] sm:$0xff]
    %v161 = vld [vmem:[%s3 + $0x8] sm:$0xff]
    %v162 = vld [vmem:[%s3 + $0x10] sm:$0xff]
    %v163 = vld [vmem:[%s3 + $0x18] sm:$0xff]
    %v164 = vld [vmem:[%s3 + $0x20] sm:$0xff]
    %v165 = vld [vmem:[%s3 + $0x28] sm:$0xff]
    %v166 = vld [vmem:[%s3 + $0x30] sm:$0xff]
    %v167 = vld [vmem:[%s3 + $0x38] sm:$0xff]
    %v168 = vld [vmem:[%s4] sm:$0x3]
    %v170 = vlaneseq
    %v171 = vshrl.u32 %v170, 7
    %v172 = vsub.s32 0, %v171
    %v173 = vrot.slane %v168, %v172
    %v174 = vlaneseq
    %v175 = vshrl.u32 %v174, 7
    %v176 = vsub.s32 1, %v175
    %v177 = vrot.slane %v168, %v176
    %vm180 = vcmask 261120
    %v182 = vsel %vm180, %v152, 0
    %v185 = vsel %vm180, %v157, 0
    %187 = vmatprep.subr.mxu0 0.0
    %188 = vmatpush1.msra.mxu0 0.0
    %189 = vmatprep.subr.mxu0 0.0
    %190 = vmatpush1.msra.mxu0 0.0
    %191 = vmatprep.subr.mxu0 0.0
    %192 = vmatpush1.msra.mxu0 0.0
    %193 = vmatprep.subr.mxu0 0.0
    %194 = vmatpush1.msra.mxu0 0.0
    %195 = vmatprep.subr.mxu0 0.0
    %196 = vmatpush1.msra.mxu0 0.0
    %197 = vmatprep.subr.mxu0 0.0
    %198 = vmatpush1.msra.mxu0 0.0
    %199 = vmatprep.subr.mxu0 0.0
    %200 = vmatpush1.msra.mxu0 0.0
    %201 = vmatprep.subr.mxu0 0.0
    %202 = vmatpush1.msra.mxu0 0.0
    %203 = vmatprep.subr.mxu0 0.0
    %204 = vmatpush1.msra.mxu0 0.0
    %205 = vmatprep.subr.mxu0 0.0
    %206 = vmatpush1.msra.mxu0 0.0
    %207 = vmatprep.subr.mxu0 0.0
    %208 = vmatpush1.msra.mxu0 0.0
    %209 = vmatprep.subr.mxu0 0.0
    %210 = vmatpush1.msra.mxu0 0.0
    %211 = vmatprep.subr.mxu0 %v167
    %212 = vmatpush1.msra.mxu0 %v166
    %213 = vmatprep.subr.mxu0 %v165
    %214 = vmatpush1.msra.mxu0 %v164
    %215 = vmatprep.subr.mxu0 %v163
    %216 = vmatpush1.msra.mxu0 %v162
    %217 = vmatprep.subr.mxu0 %v161
    %218 = vmatpush1.msra.mxu0 %v160
    %219 = vmatprep.subr.mxu0 0.0
    %220 = vmatpush2.msra.mxu0 0.0
    %221 = vmatprep.subr.mxu0 0.0
    %222 = vmatpush2.msra.mxu0 0.0
    %223 = vmatprep.subr.mxu0 0.0
    %224 = vmatpush2.msra.mxu0 0.0
    %225 = vmatprep.subr.mxu0 0.0
    %226 = vmatpush2.msra.mxu0 0.0
    %227 = vmatprep.subr.mxu0 0.0
    %228 = vmatpush2.msra.mxu0 0.0
    %229 = vmatprep.subr.mxu0 0.0
    %230 = vmatpush2.msra.mxu0 0.0
    %231 = vmatprep.subr.mxu0 0.0
    %232 = vmatpush2.msra.mxu0 0.0
    %233 = vmatprep.subr.mxu0 0.0
    %234 = vmatpush2.msra.mxu0 0.0
    %235 = vmatprep.subr.mxu0 0.0
    %236 = vmatpush2.msra.mxu0 0.0
    %237 = vmatprep.subr.mxu0 0.0
    %238 = vmatpush2.msra.mxu0 0.0
    %239 = vmatprep.subr.mxu0 0.0
    %240 = vmatpush2.msra.mxu0 0.0
    %241 = vmatprep.subr.mxu0 0.0
    %242 = vmatpush2.msra.mxu0 0.0
    %243 = vmatprep.subr.mxu0 0.0
    %244 = vmatpush2.msra.mxu0 0.0
    %245 = vmatprep.subr.mxu0 0.0
    %246 = vmatpush2.msra.mxu0 0.0
    %247 = vmatprep.subr.mxu0 0.0
    %248 = vmatpush2.msra.mxu0 0.0
    %249 = vmatprep.subr.mxu0 0.0
    %250 = vmatpush2.msra.mxu0 0.0
    %251 = vmatprep.mubr.f32.mxu0 0.0
    %252 = vmatmul.mubr.f32.gmra.mxu0 %v182
    %v253 = vpop.f32.mrf.mxu0
    %v254 = vadd.f32 %v173, %v253
    %v255 = vpop.f32.mrf.mxu0
    %v256 = vadd.f32 %v177, %v255
    %257 = vmatprep.mubr.f32.mxu0 0.0
    %258 = vmatmul.mubr.f32.gmra.mxu0 %v185
    %v259 = vpop.f32.mrf.mxu0
    %v260 = vadd.f32 %v173, %v259
    %v261 = vpop.f32.mrf.mxu0
    %v262 = vadd.f32 %v177, %v261
    %263 = vdwg.mxu0
    %v264 = vxor.u32 %v256, 2147483648
    %v265 = vxor.u32 %v262, 2147483648
    %v266 = vmul.f32 %v264, 1.442695
    %v267 = vpow.pop %v266
    %v268 = vmul.f32 %v265, 1.442695
    %v269 = vpow.pop %v268
    %v270 = vadd.f32 %v267, 1.0
    %v271 = vadd.f32 %v269, 1.0
    %v272 = vrcp.pop %v270
    %v273 = vmul.f32 1.0, %v272
    %v274 = vrcp.pop %v271
    %v275 = vmul.f32 1.0, %v274
    %v276 = vmul.f32 %v254, %v273
    %v277 = vmul.f32 %v260, %v275
    %v278 = vld [vmem:[%s5] sm:$0xff]
    %v279 = vld [vmem:[%s5 + $0x8] sm:$0xff]
    %v280 = vld [vmem:[%s5 + $0x10] sm:$0xff]
    %v281 = vld [vmem:[%s5 + $0x18] sm:$0xff]
    %v282 = vld [vmem:[%s5 + $0x20] sm:$0xff]
    %v283 = vld [vmem:[%s5 + $0x28] sm:$0xff]
    %v284 = vld [vmem:[%s5 + $0x30] sm:$0xff]
    %v285 = vld [vmem:[%s5 + $0x38] sm:$0xff]
    %v286 = vld [vmem:[%s5 + $0x40] sm:$0xff]
    %v287 = vld [vmem:[%s5 + $0x48] sm:$0xff]
    %v288 = vld [vmem:[%s5 + $0x50] sm:$0xff]
    %v289 = vld [vmem:[%s5 + $0x58] sm:$0xff]
    %v290 = vld [vmem:[%s5 + $0x60] sm:$0xff]
    %v291 = vld [vmem:[%s5 + $0x68] sm:$0xff]
    %v292 = vld [vmem:[%s5 + $0x70] sm:$0xff]
    %v293 = vld [vmem:[%s5 + $0x78] sm:$0xff]
    %v294 = vld [vmem:[%s6] sm:$0x1]
    %v296 = vlaneseq
    %v297 = vshrl.u32 %v296, 7
    %v298 = vsub.s32 0, %v297
    %v299 = vrot.slane %v294, %v298
    %301 = vmatprep.subr.mxu0 0.0
    %302 = vmatpush1.msra.mxu0 %v293
    %303 = vmatprep.subr.mxu0 0.0
    %304 = vmatpush1.msra.mxu0 %v292
    %305 = vmatprep.subr.mxu0 0.0
    %306 = vmatpush1.msra.mxu0 %v291
    %307 = vmatprep.subr.mxu0 0.0
    %308 = vmatpush1.msra.mxu0 %v290
    %309 = vmatprep.subr.mxu0 0.0
    %310 = vmatpush1.msra.mxu0 %v289
    %311 = vmatprep.subr.mxu0 0.0
    %312 = vmatpush1.msra.mxu0 %v288
    %313 = vmatprep.subr.mxu0 0.0
    %314 = vmatpush1.msra.mxu0 %v287
    %315 = vmatprep.subr.mxu0 0.0
    %316 = vmatpush1.msra.mxu0 %v286
    %317 = vmatprep.subr.mxu0 0.0
    %318 = vmatpush1.msra.mxu0 %v285
    %319 = vmatprep.subr.mxu0 0.0
    %320 = vmatpush1.msra.mxu0 %v284
    %321 = vmatprep.subr.mxu0 0.0
    %322 = vmatpush1.msra.mxu0 %v283
    %323 = vmatprep.subr.mxu0 0.0
    %324 = vmatpush1.msra.mxu0 %v282
    %325 = vmatprep.subr.mxu0 0.0
    %326 = vmatpush1.msra.mxu0 %v281
    %327 = vmatprep.subr.mxu0 0.0
    %328 = vmatpush1.msra.mxu0 %v280
    %329 = vmatprep.subr.mxu0 0.0
    %330 = vmatpush1.msra.mxu0 %v279
    %331 = vmatprep.subr.mxu0 0.0
    %332 = vmatpush1.msra.mxu0 %v278
    %333 = vmatprep.subr.mxu0 0.0
    %334 = vmatpush2.msra.mxu0 0.0
    %335 = vmatprep.subr.mxu0 0.0
    %336 = vmatpush2.msra.mxu0 0.0
    %337 = vmatprep.subr.mxu0 0.0
    %338 = vmatpush2.msra.mxu0 0.0
    %339 = vmatprep.subr.mxu0 0.0
    %340 = vmatpush2.msra.mxu0 0.0
    %341 = vmatprep.subr.mxu0 0.0
    %342 = vmatpush2.msra.mxu0 0.0
    %343 = vmatprep.subr.mxu0 0.0
    %344 = vmatpush2.msra.mxu0 0.0
    %345 = vmatprep.subr.mxu0 0.0
    %346 = vmatpush2.msra.mxu0 0.0
    %347 = vmatprep.subr.mxu0 0.0
    %348 = vmatpush2.msra.mxu0 0.0
    %349 = vmatprep.subr.mxu0 0.0
    %350 = vmatpush2.msra.mxu0 0.0
    %351 = vmatprep.subr.mxu0 0.0
    %352 = vmatpush2.msra.mxu0 0.0
    %353 = vmatprep.subr.mxu0 0.0
    %354 = vmatpush2.msra.mxu0 0.0
    %355 = vmatprep.subr.mxu0 0.0
    %356 = vmatpush2.msra.mxu0 0.0
    %357 = vmatprep.subr.mxu0 0.0
    %358 = vmatpush2.msra.mxu0 0.0
    %359 = vmatprep.subr.mxu0 0.0
    %360 = vmatpush2.msra.mxu0 0.0
    %361 = vmatprep.subr.mxu0 0.0
    %362 = vmatpush2.msra.mxu0 0.0
    %363 = vmatprep.subr.mxu0 0.0
    %364 = vmatpush2.msra.mxu0 0.0
    %365 = vmatprep.mubr.f32.mxu0 0.0
    %366 = vmatmul.mubr.f32.gmra.mxu0 %v276
    %v367 = vpop.f32.mrf.mxu0
    %v368 = vadd.f32 %v299, %v367
    %v369 = vpop.f32.mrf.mxu0
    %370 = vmatprep.mubr.f32.mxu0 0.0
    %371 = vmatmul.mubr.f32.gmra.mxu0 %v277
    %v372 = vpop.f32.mrf.mxu0
    %v373 = vadd.f32 %v299, %v372
    %v374 = vpop.f32.mrf.mxu0
    %375 = vdwg.mxu0
    %v376 = vxor.u32 %v368, 2147483648
    %v377 = vxor.u32 %v373, 2147483648
    %v378 = vmul.f32 %v376, 1.442695
    %v379 = vpow.pop %v378
    %v380 = vmul.f32 %v377, 1.442695
    %v381 = vpow.pop %v380
    %v382 = vadd.f32 %v379, 1.0
    %v383 = vadd.f32 %v381, 1.0
    %v384 = vrcp.pop %v382
    %v385 = vmul.f32 1.0, %v384
    %v386 = vrcp.pop %v383
    %v387 = vmul.f32 1.0, %v386
    %390 = vrot.lane.b32.xlu0 %v385, 96
    %v391 = vpop.permute.xlu0 %390
    %392 = vrot.lane.b32.xlu0 %v387, 96
    %v393 = vpop.permute.xlu0 %392
    %v396 = vmul.f32 %v368, %v391
    %v397 = vmul.f32 %v373, %v393
    %v398 = vadd.f32 %v396, %v152
    %v399 = vadd.f32 %v397, %v157
    %v400 = vsel %vm180, %v398, 0.0
    %401 = vadd.xlane.f32.xlu0 %v400
    %v402 = vpop.xlane.xlu0 %401
    %v403 = vsel %vm180, %v399, 0.0
    %404 = vadd.xlane.f32.xlu0 %v403
    %v405 = vpop.xlane.xlu0 %404
    %v406 = vrcp.pop 32.0
    %v407 = vmul.f32 %v402, %v406
    %v408 = vmul.f32 %v405, %v406
    %v409 = vsub.f32 %v398, %v407
    %v410 = vsub.f32 %v399, %v408
    %v411 = vmul.f32 %v409, %v409
    %v412 = vmul.f32 %v410, %v410
    %v413 = vsel %vm180, %v411, 0.0
    %414 = vadd.xlane.f32.xlu0 %v413
    %v415 = vpop.xlane.xlu0 %414
    %v416 = vsel %vm180, %v412, 0.0
    %417 = vadd.xlane.f32.xlu0 %v416
    %v418 = vpop.xlane.xlu0 %417
    %v419 = vmul.f32 %v415, %v406
    %v420 = vmul.f32 %v418, %v406
    %v421 = vadd.f32 %v419, 1e-05
    %v422 = vadd.f32 %v420, 1e-05
    %v423 = vrsqrt.pop %v421
    %v424 = vrsqrt.pop %v422
    %v425 = vmul.f32 %v409, %v423
    %v426 = vmul.f32 %v410, %v424
    %v427 = vld [vmem:[%s7] sm:$0x1]
    %v429 = vlaneseq
    %v430 = vshrl.u32 %v429, 7
    %v431 = vsub.s32 0, %v430
    %v432 = vrot.slane %v427, %v431
    %v434 = vmul.f32 %v425, %v432
    %v435 = vmul.f32 %v426, %v432
    %v436 = vld [vmem:[%s8] sm:$0x1]
    %v438 = vlaneseq
    %v439 = vshrl.u32 %v438, 7
    %v440 = vsub.s32 0, %v439
    %v441 = vrot.slane %v436, %v440
    %v443 = vadd.f32 %v434, %v441
    %v444 = vadd.f32 %v435, %v441
    %v445 = vld [vmem:[%s9] sm:$0xff]
    %v446 = vld [vmem:[%s9 + $0x8] sm:$0xff]
    %v447 = vld [vmem:[%s9 + $0x10] sm:$0xff]
    %v448 = vld [vmem:[%s9 + $0x18] sm:$0xff]
    %v449 = vld [vmem:[%s9 + $0x20] sm:$0xff]
    %v450 = vld [vmem:[%s9 + $0x28] sm:$0xff]
    %v451 = vld [vmem:[%s9 + $0x30] sm:$0xff]
    %v452 = vld [vmem:[%s9 + $0x38] sm:$0xff]
    %v453 = vld [vmem:[%s10] sm:$0x3]
    %v455 = vlaneseq
    %v456 = vshrl.u32 %v455, 7
    %v457 = vsub.s32 0, %v456
    %v458 = vrot.slane %v453, %v457
    %v459 = vlaneseq
    %v460 = vshrl.u32 %v459, 7
    %v461 = vsub.s32 1, %v460
    %v462 = vrot.slane %v453, %v461
    %v466 = vsel %vm180, %v443, 0
    %v469 = vsel %vm180, %v444, 0
    %471 = vmatprep.subr.mxu0 0.0
    %472 = vmatpush1.msra.mxu0 0.0
    %473 = vmatprep.subr.mxu0 0.0
    %474 = vmatpush1.msra.mxu0 0.0
    %475 = vmatprep.subr.mxu0 0.0
    %476 = vmatpush1.msra.mxu0 0.0
    %477 = vmatprep.subr.mxu0 0.0
    %478 = vmatpush1.msra.mxu0 0.0
    %479 = vmatprep.subr.mxu0 0.0
    %480 = vmatpush1.msra.mxu0 0.0
    %481 = vmatprep.subr.mxu0 0.0
    %482 = vmatpush1.msra.mxu0 0.0
    %483 = vmatprep.subr.mxu0 0.0
    %484 = vmatpush1.msra.mxu0 0.0
    %485 = vmatprep.subr.mxu0 0.0
    %486 = vmatpush1.msra.mxu0 0.0
    %487 = vmatprep.subr.mxu0 0.0
    %488 = vmatpush1.msra.mxu0 0.0
    %489 = vmatprep.subr.mxu0 0.0
    %490 = vmatpush1.msra.mxu0 0.0
    %491 = vmatprep.subr.mxu0 0.0
    %492 = vmatpush1.msra.mxu0 0.0
    %493 = vmatprep.subr.mxu0 0.0
    %494 = vmatpush1.msra.mxu0 0.0
    %495 = vmatprep.subr.mxu0 %v452
    %496 = vmatpush1.msra.mxu0 %v451
    %497 = vmatprep.subr.mxu0 %v450
    %498 = vmatpush1.msra.mxu0 %v449
    %499 = vmatprep.subr.mxu0 %v448
    %500 = vmatpush1.msra.mxu0 %v447
    %501 = vmatprep.subr.mxu0 %v446
    %502 = vmatpush1.msra.mxu0 %v445
    %503 = vmatprep.subr.mxu0 0.0
    %504 = vmatpush2.msra.mxu0 0.0
    %505 = vmatprep.subr.mxu0 0.0
    %506 = vmatpush2.msra.mxu0 0.0
    %507 = vmatprep.subr.mxu0 0.0
    %508 = vmatpush2.msra.mxu0 0.0
    %509 = vmatprep.subr.mxu0 0.0
    %510 = vmatpush2.msra.mxu0 0.0
    %511 = vmatprep.subr.mxu0 0.0
    %512 = vmatpush2.msra.mxu0 0.0
    %513 = vmatprep.subr.mxu0 0.0
    %514 = vmatpush2.msra.mxu0 0.0
    %515 = vmatprep.subr.mxu0 0.0
    %516 = vmatpush2.msra.mxu0 0.0
    %517 = vmatprep.subr.mxu0 0.0
    %518 = vmatpush2.msra.mxu0 0.0
    %519 = vmatprep.subr.mxu0 0.0
    %520 = vmatpush2.msra.mxu0 0.0
    %521 = vmatprep.subr.mxu0 0.0
    %522 = vmatpush2.msra.mxu0 0.0
    %523 = vmatprep.subr.mxu0 0.0
    %524 = vmatpush2.msra.mxu0 0.0
    %525 = vmatprep.subr.mxu0 0.0
    %526 = vmatpush2.msra.mxu0 0.0
    %527 = vmatprep.subr.mxu0 0.0
    %528 = vmatpush2.msra.mxu0 0.0
    %529 = vmatprep.subr.mxu0 0.0
    %530 = vmatpush2.msra.mxu0 0.0
    %531 = vmatprep.subr.mxu0 0.0
    %532 = vmatpush2.msra.mxu0 0.0
    %533 = vmatprep.subr.mxu0 0.0
    %534 = vmatpush2.msra.mxu0 0.0
    %535 = vmatprep.mubr.f32.mxu0 0.0
    %536 = vmatmul.mubr.f32.gmra.mxu0 %v466
    %v537 = vpop.f32.mrf.mxu0
    %v538 = vadd.f32 %v458, %v537
    %v539 = vpop.f32.mrf.mxu0
    %v540 = vadd.f32 %v462, %v539
    %541 = vmatprep.mubr.f32.mxu0 0.0
    %542 = vmatmul.mubr.f32.gmra.mxu0 %v469
    %v543 = vpop.f32.mrf.mxu0
    %v544 = vadd.f32 %v458, %v543
    %v545 = vpop.f32.mrf.mxu0
    %v546 = vadd.f32 %v462, %v545
    %547 = vdwg.mxu0
    %v548 = vxor.u32 %v540, 2147483648
    %v549 = vxor.u32 %v546, 2147483648
    %v550 = vmul.f32 %v548, 1.442695
    %v551 = vpow.pop %v550
    %v552 = vmul.f32 %v549, 1.442695
    %v553 = vpow.pop %v552
    %v554 = vadd.f32 %v551, 1.0
    %v555 = vadd.f32 %v553, 1.0
    %v556 = vrcp.pop %v554
    %v557 = vmul.f32 1.0, %v556
    %v558 = vrcp.pop %v555
    %v559 = vmul.f32 1.0, %v558
    %v560 = vmul.f32 %v538, %v557
    %v561 = vmul.f32 %v544, %v559
    %v562 = vld [vmem:[%s11] sm:$0xff]
    %v563 = vld [vmem:[%s11 + $0x8] sm:$0xff]
    %v564 = vld [vmem:[%s11 + $0x10] sm:$0xff]
    %v565 = vld [vmem:[%s11 + $0x18] sm:$0xff]
    %v566 = vld [vmem:[%s11 + $0x20] sm:$0xff]
    %v567 = vld [vmem:[%s11 + $0x28] sm:$0xff]
    %v568 = vld [vmem:[%s11 + $0x30] sm:$0xff]
    %v569 = vld [vmem:[%s11 + $0x38] sm:$0xff]
    %v570 = vld [vmem:[%s11 + $0x40] sm:$0xff]
    %v571 = vld [vmem:[%s11 + $0x48] sm:$0xff]
    %v572 = vld [vmem:[%s11 + $0x50] sm:$0xff]
    %v573 = vld [vmem:[%s11 + $0x58] sm:$0xff]
    %v574 = vld [vmem:[%s11 + $0x60] sm:$0xff]
    %v575 = vld [vmem:[%s11 + $0x68] sm:$0xff]
    %v576 = vld [vmem:[%s11 + $0x70] sm:$0xff]
    %v577 = vld [vmem:[%s11 + $0x78] sm:$0xff]
    %v578 = vld [vmem:[%s12] sm:$0x1]
    %v580 = vlaneseq
    %v581 = vshrl.u32 %v580, 7
    %v582 = vsub.s32 0, %v581
    %v583 = vrot.slane %v578, %v582
    %585 = vmatprep.subr.mxu0 0.0
    %586 = vmatpush1.msra.mxu0 %v577
    %587 = vmatprep.subr.mxu0 0.0
    %588 = vmatpush1.msra.mxu0 %v576
    %589 = vmatprep.subr.mxu0 0.0
    %590 = vmatpush1.msra.mxu0 %v575
    %591 = vmatprep.subr.mxu0 0.0
    %592 = vmatpush1.msra.mxu0 %v574
    %593 = vmatprep.subr.mxu0 0.0
    %594 = vmatpush1.msra.mxu0 %v573
    %595 = vmatprep.subr.mxu0 0.0
    %596 = vmatpush1.msra.mxu0 %v572
    %597 = vmatprep.subr.mxu0 0.0
    %598 = vmatpush1.msra.mxu0 %v571
    %599 = vmatprep.subr.mxu0 0.0
    %600 = vmatpush1.msra.mxu0 %v570
    %601 = vmatprep.subr.mxu0 0.0
    %602 = vmatpush1.msra.mxu0 %v569
    %603 = vmatprep.subr.mxu0 0.0
    %604 = vmatpush1.msra.mxu0 %v568
    %605 = vmatprep.subr.mxu0 0.0
    %606 = vmatpush1.msra.mxu0 %v567
    %607 = vmatprep.subr.mxu0 0.0
    %608 = vmatpush1.msra.mxu0 %v566
    %609 = vmatprep.subr.mxu0 0.0
    %610 = vmatpush1.msra.mxu0 %v565
    %611 = vmatprep.subr.mxu0 0.0
    %612 = vmatpush1.msra.mxu0 %v564
    %613 = vmatprep.subr.mxu0 0.0
    %614 = vmatpush1.msra.mxu0 %v563
    %615 = vmatprep.subr.mxu0 0.0
    %616 = vmatpush1.msra.mxu0 %v562
    %617 = vmatprep.subr.mxu0 0.0
    %618 = vmatpush2.msra.mxu0 0.0
    %619 = vmatprep.subr.mxu0 0.0
    %620 = vmatpush2.msra.mxu0 0.0
    %621 = vmatprep.subr.mxu0 0.0
    %622 = vmatpush2.msra.mxu0 0.0
    %623 = vmatprep.subr.mxu0 0.0
    %624 = vmatpush2.msra.mxu0 0.0
    %625 = vmatprep.subr.mxu0 0.0
    %626 = vmatpush2.msra.mxu0 0.0
    %627 = vmatprep.subr.mxu0 0.0
    %628 = vmatpush2.msra.mxu0 0.0
    %629 = vmatprep.subr.mxu0 0.0
    %630 = vmatpush2.msra.mxu0 0.0
    %631 = vmatprep.subr.mxu0 0.0
    %632 = vmatpush2.msra.mxu0 0.0
    %633 = vmatprep.subr.mxu0 0.0
    %634 = vmatpush2.msra.mxu0 0.0
    %635 = vmatprep.subr.mxu0 0.0
    %636 = vmatpush2.msra.mxu0 0.0
    %637 = vmatprep.subr.mxu0 0.0
    %638 = vmatpush2.msra.mxu0 0.0
    %639 = vmatprep.subr.mxu0 0.0
    %640 = vmatpush2.msra.mxu0 0.0
    %641 = vmatprep.subr.mxu0 0.0
    %642 = vmatpush2.msra.mxu0 0.0
    %643 = vmatprep.subr.mxu0 0.0
    %644 = vmatpush2.msra.mxu0 0.0
    %645 = vmatprep.subr.mxu0 0.0
    %646 = vmatpush2.msra.mxu0 0.0
    %647 = vmatprep.subr.mxu0 0.0
    %648 = vmatpush2.msra.mxu0 0.0
    %649 = vmatprep.mubr.f32.mxu0 0.0
    %650 = vmatmul.mubr.f32.gmra.mxu0 %v560
    %v651 = vpop.f32.mrf.mxu0
    %v652 = vadd.f32 %v583, %v651
    %v653 = vpop.f32.mrf.mxu0
    %654 = vmatprep.mubr.f32.mxu0 0.0
    %655 = vmatmul.mubr.f32.gmra.mxu0 %v561
    %v656 = vpop.f32.mrf.mxu0
    %v657 = vadd.f32 %v583, %v656
    %v658 = vpop.f32.mrf.mxu0
    %659 = vdwg.mxu0
    %v660 = vxor.u32 %v652, 2147483648
    %v661 = vxor.u32 %v657, 2147483648
    %v662 = vmul.f32 %v660, 1.442695
    %v663 = vpow.pop %v662
    %v664 = vmul.f32 %v661, 1.442695
    %v665 = vpow.pop %v664
    %v666 = vadd.f32 %v663, 1.0
    %v667 = vadd.f32 %v665, 1.0
    %v668 = vrcp.pop %v666
    %v669 = vmul.f32 1.0, %v668
    %v670 = vrcp.pop %v667
    %v671 = vmul.f32 1.0, %v670
    %674 = vrot.lane.b32.xlu0 %v669, 96
    %v675 = vpop.permute.xlu0 %674
    %676 = vrot.lane.b32.xlu0 %v671, 96
    %v677 = vpop.permute.xlu0 %676
    %v680 = vmul.f32 %v652, %v675
    %v681 = vmul.f32 %v657, %v677
    %v682 = vadd.f32 %v680, %v443
    %v683 = vadd.f32 %v681, %v444
    %v684 = vsel %vm180, %v682, 0.0
    %685 = vadd.xlane.f32.xlu0 %v684
    %v686 = vpop.xlane.xlu0 %685
    %v687 = vsel %vm180, %v683, 0.0
    %688 = vadd.xlane.f32.xlu0 %v687
    %v689 = vpop.xlane.xlu0 %688
    %v690 = vmul.f32 %v686, %v406
    %v691 = vmul.f32 %v689, %v406
    %v692 = vsub.f32 %v682, %v690
    %v693 = vsub.f32 %v683, %v691
    %v694 = vmul.f32 %v692, %v692
    %v695 = vmul.f32 %v693, %v693
    %v696 = vsel %vm180, %v694, 0.0
    %697 = vadd.xlane.f32.xlu0 %v696
    %v698 = vpop.xlane.xlu0 %697
    %v699 = vsel %vm180, %v695, 0.0
    %700 = vadd.xlane.f32.xlu0 %v699
    %v701 = vpop.xlane.xlu0 %700
    %v702 = vmul.f32 %v698, %v406
    %v703 = vmul.f32 %v701, %v406
    %v704 = vadd.f32 %v702, 1e-05
    %v705 = vadd.f32 %v703, 1e-05
    %v706 = vrsqrt.pop %v704
    %v707 = vrsqrt.pop %v705
    %v708 = vmul.f32 %v692, %v706
    %v709 = vmul.f32 %v693, %v707
    %v710 = vld [vmem:[%s13] sm:$0x1]
    %v712 = vlaneseq
    %v713 = vshrl.u32 %v712, 7
    %v714 = vsub.s32 0, %v713
    %v715 = vrot.slane %v710, %v714
    %v717 = vmul.f32 %v708, %v715
    %v718 = vmul.f32 %v709, %v715
    %v719 = vld [vmem:[%s14] sm:$0x1]
    %v721 = vlaneseq
    %v722 = vshrl.u32 %v721, 7
    %v723 = vsub.s32 0, %v722
    %v724 = vrot.slane %v719, %v723
    %v726 = vadd.f32 %v717, %v724
    %v727 = vadd.f32 %v718, %v724
    %v728 = vsel %vm180, %v726, 0.0
    %v729 = vrot.slane %v728, 4
    %v730 = vadd.f32 %v728, %v729
    %v731 = vrot.slane %v730, 2
    %v732 = vadd.f32 %v730, %v731
    %v733 = vrot.slane %v732, 1
    %v734 = vadd.f32 %v732, %v733
    %v735 = vrcp.pop 8.0
    %v736 = vmul.f32 %v734, %v735
    %v737 = vsel %vm180, %v727, 0.0
    %v738 = vrot.slane %v737, 4
    %v739 = vadd.f32 %v737, %v738
    %v740 = vrot.slane %v739, 2
    %v741 = vadd.f32 %v739, %v740
    %v742 = vrot.slane %v741, 1
    %v743 = vadd.f32 %v741, %v742
    %v744 = vmul.f32 %v743, %v735
    %vm745 = vcmask 1040384
    %v746 = vsel %vm745, %v736, %v744
    %vm747 = vcmask 254976
    %748 = vst.msk [vmem:[#allocation2] sm:$0x3] %vm747, %v746
    // Predicated region
    $region62: #{tpu_custom_call.1} parent=1 // pred_check
      _
    $region63: #{tpu_custom_call.1} parent=1 // pred_check_branch
      %750 = sbr.rel (0) target = $region65
    $region64: #{tpu_custom_call.1} parent=1 // pred_region
      %s752 = ssub.s32 32, 32
      %753 = vsyncadd [#allocation3], %s752
      %s755 = sshll.u32 [#allocation2], 4
      %s756 = int_to_ptr.vmem [resolvable:$true] %s755
      %758 = dma.vmem_to_hbm [thread:$0]  %s756, 32, %s15, [#allocation3]
    $region65: #{tpu_custom_call.1} parent=1 // pred_fallthru
      _
    // Predicated region
    $region66: #{tpu_custom_call.1} parent=1 // pred_check
      _
    $region67: #{tpu_custom_call.1} parent=1 // pred_check_branch
      %760 = sbr.rel (0) target = $region69
    $region68: #{tpu_custom_call.1} parent=1 // pred_region
      %761 = dma.done [#allocation3], 32
    $region69: #{tpu_custom_call.1} parent=1 // pred_fallthru
      _
    %762 = vsyncpa [#allocation3], 1

</llo_original>
